<compile_context>
chip_gen: v6e
topology: v6e:2x2x1
jax: 0.10.0
libtpu: 0.0.40
codegen_flags: <defaults>
</compile_context>

<pallas_src>
import functools

import jax
import jax.numpy as jnp
from jax.experimental import pallas as pl
from jax.experimental.pallas import tpu as pltpu


def _round_up(x, m):
    return (x + m - 1) // m * m


# ----------------------------- kernels --------------------------------------


def _ffn_kernel_f32out(x_ref, w1_ref, b1_ref, w2_ref, b2_ref, o_ref):
    """f32-output variant: o_ref is resident across the k axis and doubles as
    the accumulator (no VMEM scratch)."""
    k = pl.program_id(1)

    @pl.when(k == 0)
    def _():
        o_ref[...] = jnp.zeros_like(o_ref)

    # h_chunk = relu(x @ W1[:, chunk] + b1[chunk])  -- bf16 in, f32 accumulate.
    h = jnp.dot(x_ref[...], w1_ref[...],
                preferred_element_type=jnp.float32) + b1_ref[...]
    h = jnp.maximum(h, 0.0)                     # dropout (eval) == identity

    o_ref[...] += jnp.dot(h.astype(jnp.bfloat16), w2_ref[...],
                          preferred_element_type=jnp.float32)

    @pl.when(k == pl.num_programs(1) - 1)
    def _():
        o_ref[...] += b2_ref[...]


def _ffn_kernel_acc(x_ref, w1_ref, b1_ref, w2_ref, b2_ref, o_ref, acc_ref):
    """Generic-output-dtype variant (e.g. bf16 out): f32 scratch accumulator."""
    k = pl.program_id(1)

    @pl.when(k == 0)
    def _():
        acc_ref[...] = jnp.zeros_like(acc_ref)

    h = jnp.dot(x_ref[...], w1_ref[...],
                preferred_element_type=jnp.float32) + b1_ref[...]
    h = jnp.maximum(h, 0.0)

    acc_ref[...] += jnp.dot(h.astype(jnp.bfloat16), w2_ref[...],
                            preferred_element_type=jnp.float32)

    @pl.when(k == pl.num_programs(1) - 1)
    def _():
        o_ref[...] = (acc_ref[...] + b2_ref[...]).astype(o_ref.dtype)


# ------------------------- config & param prep ------------------------------


def ffn_config(M, d_model, middle, *, tm=None, tmid=None, vmem_limit_bytes=None):
    """Pick per-generation tile sizes and padded dims (all static Python ints)."""
    kind = jax.devices()[0].device_kind.lower()
    if "v6" in kind:                         # v6e: 128 MiB VMEM, ~650 FLOP/B crossover
        d_tm, d_tmid, d_vmem = 1024, 1024, 100 * 1024 * 1024
    elif "v5 lite" in kind or "v5e" in kind or "v5lite" in kind:
        d_tm, d_tmid, d_vmem = 512, 512, 64 * 1024 * 1024
    else:                                    # v7x (64 MiB physical VMEM) / unknown
        d_tm, d_tmid, d_vmem = 512, 512, 56 * 1024 * 1024
    tm = d_tm if tm is None else tm
    tmid = d_tmid if tmid is None else tmid
    vmem_limit_bytes = d_vmem if vmem_limit_bytes is None else vmem_limit_bytes

    ROW = 16                                 # bf16 sublane packing
    dp = _round_up(d_model, 128)             # lane-dense K / output dim

    # Row tiling with minimal zero-row waste: split M into ceil(M/tm) near-equal
    # 16-aligned tiles (at most ROW-1 padded rows per tile, not up to tm-1).
    # NOTE(v7x megacore): with >=2 row tiles the "parallel" axis shards across
    # both TensorCores; a single row tile leaves one core idle.
    tm = min(tm, _round_up(M, ROW))
    n_row_tiles = -(-M // tm)
    tm = _round_up(-(-M // n_row_tiles), ROW)
    Mp = tm * n_row_tiles

    tmid = min(tmid, _round_up(middle, 128))
    midp = _round_up(middle, tmid)

    return dict(tm=tm, tmid=tmid, dp=dp, midp=midp, Mp=Mp,
                vmem_limit_bytes=vmem_limit_bytes)


def pad_ffn_params(w1_t, b1, w2_t, b2, dp, midp):
    """One-time padding + bf16 cast of the FFN parameters (hoisted out of the
    per-call hot path).  Zero padding is mathematically inert: zero weight
    rows/cols contribute nothing, padded biases are 0 and relu(0) == 0.

    w1_t: (d_model, middle) = fc1.weight.T    b1: (middle,)
    w2_t: (middle, d_model) = fc2.weight.T    b2: (d_model,)
    """
    d_model, middle = w1_t.shape
    w1_p = jnp.zeros((dp, midp), jnp.bfloat16).at[:d_model, :middle].set(
        w1_t.astype(jnp.bfloat16))
    b1_p = jnp.zeros((1, midp), jnp.float32).at[0, :middle].set(
        b1.astype(jnp.float32))
    w2_p = jnp.zeros((midp, dp), jnp.bfloat16).at[:middle, :d_model].set(
        w2_t.astype(jnp.bfloat16))
    b2_p = jnp.zeros((1, dp), jnp.float32).at[0, :d_model].set(
        b2.astype(jnp.float32))
    return w1_p, b1_p, w2_p, b2_p


# ------------------------------ forward --------------------------------------


@functools.partial(jax.jit, static_argnames=("tm", "tmid", "vmem_limit_bytes"))
def feed_forward_padded(x, w1_p, b1_p, w2_p, b2_p, *, tm, tmid,
                        vmem_limit_bytes):
    """FeedForward forward pass (eval mode) on pre-padded bf16 parameters.

    x: (batch, seq, d_model); w1_p: (dp, midp) bf16; b1_p: (1, midp) f32;
    w2_p: (midp, dp) bf16; b2_p: (1, dp) f32.  Output dtype == x.dtype
    (weights/activations are down-cast to bf16 for the MXU, f32 accumulation).
    """
    batch, seq, d_model = x.shape
    M = batch * seq
    dp, midp = w1_p.shape
    assert dp % 128 == 0 and midp % tmid == 0 and tmid % 128 == 0 and tm % 8 == 0

    Mp = _round_up(M, tm)
    pad_rows, pad_cols = Mp - M, dp - d_model

    x2d = x.reshape(M, d_model).astype(jnp.bfloat16)
    if pad_rows or pad_cols:
        x_p = jnp.pad(x2d, ((0, pad_rows), (0, pad_cols)))
    else:
        x_p = x2d                              # aligned case: no extra HBM pass

    grid = (Mp // tm, midp // tmid)            # rows "parallel", middle "arbitrary"
    in_specs = [
        pl.BlockSpec((tm, dp),   lambda i, k: (i, 0)),   # x row tile
        pl.BlockSpec((dp, tmid), lambda i, k: (0, k)),   # W1^T column chunk
        pl.BlockSpec((1, tmid),  lambda i, k: (0, k)),   # b1 chunk
        pl.BlockSpec((tmid, dp), lambda i, k: (k, 0)),   # W2^T row chunk
        pl.BlockSpec((1, dp),    lambda i, k: (0, 0)),   # b2 (grid-invariant)
    ]
    out_spec = pl.BlockSpec((tm, dp), lambda i, k: (i, 0))
    cparams = pltpu.CompilerParams(
        dimension_semantics=("parallel", "arbitrary"),
        vmem_limit_bytes=vmem_limit_bytes)

    if x.dtype == jnp.float32:
        # f32 output doubles as the accumulator: no scratch, smaller VMEM footprint.
        out_p = pl.pallas_call(
            _ffn_kernel_f32out,
            out_shape=jax.ShapeDtypeStruct((Mp, dp), jnp.float32),
            grid_spec=pltpu.PrefetchScalarGridSpec(
                num_scalar_prefetch=0, grid=grid,
                in_specs=in_specs, out_specs=out_spec),
            compiler_params=cparams,
        )(x_p, w1_p, b1_p, w2_p, b2_p)
    else:
        out_p = pl.pallas_call(
            _ffn_kernel_acc,
            out_shape=jax.ShapeDtypeStruct((Mp, dp), x.dtype),
            grid_spec=pltpu.PrefetchScalarGridSpec(
                num_scalar_prefetch=0, grid=grid,
                in_specs=in_specs, out_specs=out_spec,
                scratch_shapes=[pltpu.VMEM((tm, dp), jnp.float32)]),
            compiler_params=cparams,
        )(x_p, w1_p, b1_p, w2_p, b2_p)

    if pad_rows or pad_cols:
        out_p = out_p[:M, :d_model]
    return out_p.reshape(batch, seq, d_model)


def feed_forward(x, w1_t, b1, w2_t, b2):
    """Convenience one-shot wrapper (pads params per call; for repeated calls
    pre-pad once with pad_ffn_params and call feed_forward_padded directly)."""
    batch, seq, d_model = x.shape
    middle = w1_t.shape[1]
    cfg = ffn_config(batch * seq, d_model, middle)
    w1_p, b1_p, w2_p, b2_p = pad_ffn_params(w1_t, b1, w2_t, b2,
                                            cfg["dp"], cfg["midp"])
    return feed_forward_padded(x, w1_p, b1_p, w2_p, b2_p,
                               tm=cfg["tm"], tmid=cfg["tmid"],
                               vmem_limit_bytes=cfg["vmem_limit_bytes"])


def init_params(key, d_model, middle_dim):
    """Deterministic init mirroring nn.Linear shapes (W: (out, in), b: (out,))."""
    k1, k2, k3, k4 = jax.random.split(key, 4)
    lim1 = 1.0 / (d_model ** 0.5)
    lim2 = 1.0 / (middle_dim ** 0.5)
    w1 = jax.random.uniform(k1, (middle_dim, d_model), jnp.float32, -lim1, lim1)
    b1 = jax.random.uniform(k2, (middle_dim,), jnp.float32, -lim1, lim1)
    w2 = jax.random.uniform(k3, (d_model, middle_dim), jnp.float32, -lim2, lim2)
    b2 = jax.random.uniform(k4, (d_model,), jnp.float32, -lim2, lim2)
    return w1, b1, w2, b2


if __name__ == "__main__":
    key = jax.random.PRNGKey(0)
    batch, seq, d_model, middle_dim = 2, 8, 32, 64

    kx, kp = jax.random.split(key)
    x = jax.random.normal(kx, (batch, seq, d_model), jnp.float32)
    w1, b1, w2, b2 = init_params(kp, d_model, middle_dim)

    # Hoisted, one-time parameter padding + bf16 cast (outside the jitted call).
    cfg = ffn_config(batch * seq, d_model, middle_dim)
    w1_p, b1_p, w2_p, b2_p = pad_ffn_params(w1.T, b1, w2.T, b2,
                                            cfg["dp"], cfg["midp"])

    out = feed_forward_padded(x, w1_p, b1_p, w2_p, b2_p,
                              tm=cfg["tm"], tmid=cfg["tmid"],
                              vmem_limit_bytes=cfg["vmem_limit_bytes"])
    out = jax.block_until_ready(out)

    # Reference check (plain JAX f32, PyTorch semantics: x @ W^T + b).
    # Tolerance is loosened because the kernel feeds the MXU bf16 inputs
    # (f32 accumulation); error grows with `middle`, so validate at real sizes too.
    ref = jnp.maximum(x @ w1.T + b1, 0.0) @ w2.T + b2
    assert out.shape == (batch, seq, d_model)
    assert jnp.allclose(out, ref, atol=5e-2, rtol=5e-2), (
        float(jnp.max(jnp.abs(out - ref))))

    print("KERNEL_OK")
</pallas_src>

<mosaic_0001>
module attributes {stable_mosaic.version = 11 : i64} {
  func.func @_ffn_kernel_f32out(%arg0: i32, %arg1: i32, %arg2: memref<16x128xbf16, #tpu.memory_space<vmem>>, %arg3: memref<128x128xbf16, #tpu.memory_space<vmem>>, %arg4: memref<1x128xf32, #tpu.memory_space<vmem>>, %arg5: memref<128x128xbf16, #tpu.memory_space<vmem>>, %arg6: memref<1x128xf32, #tpu.memory_space<vmem>>, %arg7: memref<16x128xf32, #tpu.memory_space<vmem>>) attributes {dimension_semantics = [#tpu.dimension_semantics<parallel>, #tpu.dimension_semantics<arbitrary>], iteration_bounds = array<i64: 1, 1>, scalar_prefetch = 0 : i64, scratch_operands = 0 : i64, tpu.core_type = #tpu.core_type<tc>, window_params = [{transform_indices = @transform_0, window_bounds = array<i64: 16, 128>}, {transform_indices = @transform_1, window_bounds = array<i64: 128, 128>}, {transform_indices = @transform_2, window_bounds = array<i64: 1, 128>}, {transform_indices = @transform_3, window_bounds = array<i64: 128, 128>}, {pipeline_mode = #tpu.pipeline_mode<synchronous>, transform_indices = @transform_4, window_bounds = array<i64: 1, 128>}, {transform_indices = @transform_5, window_bounds = array<i64: 16, 128>}]} {
    %c0_i32 = arith.constant 0 : i32
    %0 = arith.cmpi eq, %arg1, %c0_i32 : i32
    %1 = arith.extui %0 : i1 to i32
    %c0_i32_0 = arith.constant 0 : i32
    %2 = arith.cmpi ne, %1, %c0_i32_0 : i32
    scf.if %2 {
      %cst_16 = arith.constant 0.000000e+00 : f32
      %20 = vector.broadcast %cst_16 : f32 to vector<16x128xf32>
      %c0_17 = arith.constant 0 : index
      %c0_18 = arith.constant 0 : index
      %21 = vector.load %arg7[%c0_17, %c0_18] : memref<16x128xf32, #tpu.memory_space<vmem>>, vector<16x128xf32>
      tpu.vector_store %arg7[%c0_17, %c0_18], %20 {strides = array<i32>} : memref<16x128xf32, #tpu.memory_space<vmem>>, vector<16x128xf32>,
    } else {
    }
    %c0 = arith.constant 0 : index
    %c0_1 = arith.constant 0 : index
    %3 = vector.load %arg2[%c0, %c0_1] : memref<16x128xbf16, #tpu.memory_space<vmem>>, vector<16x128xbf16>
    %c0_2 = arith.constant 0 : index
    %c0_3 = arith.constant 0 : index
    %4 = vector.load %arg3[%c0_2, %c0_3] : memref<128x128xbf16, #tpu.memory_space<vmem>>, vector<128x128xbf16>
    %cst = arith.constant dense<0.000000e+00> : vector<16x128xf32>
    %5 = tpu.matmul %3, %4, %cst {dimension_numbers = #tpu.dot_dimension_numbers<[1], [0], [0], [1], [0, 0, 1, 1], [], []>} : vector<16x128xbf16>, vector<128x128xbf16>, vector<16x128xf32> -> vector<16x128xf32>
    %c0_4 = arith.constant 0 : index
    %c0_5 = arith.constant 0 : index
    %6 = vector.load %arg4[%c0_4, %c0_5] : memref<1x128xf32, #tpu.memory_space<vmem>>, vector<1x128xf32>
    %7 = vector.broadcast %6 : vector<1x128xf32> to vector<16x128xf32>
    %8 = arith.addf %5, %7 : vector<16x128xf32>
    %cst_6 = arith.constant 0.000000e+00 : f32
    %9 = vector.broadcast %cst_6 : f32 to vector<16x128xf32>
    %10 = arith.maximumf %8, %9 : vector<16x128xf32>
    %c0_7 = arith.constant 0 : index
    %c0_8 = arith.constant 0 : index
    %11 = vector.load %arg7[%c0_7, %c0_8] : memref<16x128xf32, #tpu.memory_space<vmem>>, vector<16x128xf32>
    %12 = arith.truncf %10 : vector<16x128xf32> to vector<16x128xbf16>
    %c0_9 = arith.constant 0 : index
    %c0_10 = arith.constant 0 : index
    %13 = vector.load %arg5[%c0_9, %c0_10] : memref<128x128xbf16, #tpu.memory_space<vmem>>, vector<128x128xbf16>
    %cst_11 = arith.constant dense<0.000000e+00> : vector<16x128xf32>
    %14 = tpu.matmul %12, %13, %cst_11 {dimension_numbers = #tpu.dot_dimension_numbers<[1], [0], [0], [1], [0, 0, 1, 1], [], []>} : vector<16x128xbf16>, vector<128x128xbf16>, vector<16x128xf32> -> vector<16x128xf32>
    %15 = arith.addf %11, %14 : vector<16x128xf32>
    %c0_12 = arith.constant 0 : index
    %c0_13 = arith.constant 0 : index
    %16 = vector.load %arg7[%c0_12, %c0_13] : memref<16x128xf32, #tpu.memory_space<vmem>>, vector<16x128xf32>
    tpu.vector_store %arg7[%c0_12, %c0_13], %15 {strides = array<i32>} : memref<16x128xf32, #tpu.memory_space<vmem>>, vector<16x128xf32>,
    %c0_i32_14 = arith.constant 0 : i32
    %17 = arith.cmpi eq, %arg1, %c0_i32_14 : i32
    %18 = arith.extui %17 : i1 to i32
    %c0_i32_15 = arith.constant 0 : i32
    %19 = arith.cmpi ne, %18, %c0_i32_15 : i32
    scf.if %19 {
      %c0_16 = arith.constant 0 : index
      %c0_17 = arith.constant 0 : index
      %20 = vector.load %arg7[%c0_16, %c0_17] : memref<16x128xf32, #tpu.memory_space<vmem>>, vector<16x128xf32>
      %c0_18 = arith.constant 0 : index
      %c0_19 = arith.constant 0 : index
      %21 = vector.load %arg6[%c0_18, %c0_19] : memref<1x128xf32, #tpu.memory_space<vmem>>, vector<1x128xf32>
      %22 = vector.broadcast %21 : vector<1x128xf32> to vector<16x128xf32>
      %23 = arith.addf %20, %22 : vector<16x128xf32>
      %c0_20 = arith.constant 0 : index
      %c0_21 = arith.constant 0 : index
      %24 = vector.load %arg7[%c0_20, %c0_21] : memref<16x128xf32, #tpu.memory_space<vmem>>, vector<16x128xf32>
      tpu.vector_store %arg7[%c0_20, %c0_21], %23 {strides = array<i32>} : memref<16x128xf32, #tpu.memory_space<vmem>>, vector<16x128xf32>,
    } else {
    }
    return
  }
  func.func @transform_0(%arg0: i32, %arg1: i32) -> (i32, i32) {
    %c0_i32 = arith.constant 0 : i32
    %c0_i32_0 = arith.constant 0 : i32
    return %arg0, %c0_i32 : i32, i32
  }
  func.func @transform_1(%arg0: i32, %arg1: i32) -> (i32, i32) {
    %c0_i32 = arith.constant 0 : i32
    %c0_i32_0 = arith.constant 0 : i32
    return %c0_i32, %arg1 : i32, i32
  }
  func.func @transform_2(%arg0: i32, %arg1: i32) -> (i32, i32) {
    %c0_i32 = arith.constant 0 : i32
    %c0_i32_0 = arith.constant 0 : i32
    return %c0_i32, %arg1 : i32, i32
  }
  func.func @transform_3(%arg0: i32, %arg1: i32) -> (i32, i32) {
    %c0_i32 = arith.constant 0 : i32
    %c0_i32_0 = arith.constant 0 : i32
    return %arg1, %c0_i32 : i32, i32
  }
  func.func @transform_4(%arg0: i32, %arg1: i32) -> (i32, i32) {
    %c0_i32 = arith.constant 0 : i32
    %c0_i32_0 = arith.constant 0 : i32
    %c0_i32_1 = arith.constant 0 : i32
    return %c0_i32, %c0_i32_0 : i32, i32
  }
  func.func @transform_5(%arg0: i32, %arg1: i32) -> (i32, i32) {
    %c0_i32 = arith.constant 0 : i32
    %c0_i32_0 = arith.constant 0 : i32
    return %arg0, %c0_i32 : i32, i32
  }
}

</mosaic_0001>

<llo_original>
// kernel: feed_forward_padded.1
$region0: #{feed_forward_padded.1}
  #allocation0 [shape = 'u32[]', space=smem, size = 0x4, offset = 0x4, fixed_abs, tag = 'smem constant byte address 0x4 - core index']
  #allocation1 [shape = 'u32[144,128]{1,0:T(1,128)}', space=vmem, size = 0x12000, scoped, tag = 'internal scratch']
  %s0 = inlined_call_operand.vmem [shape: bf16[16,128], index: 0, kind: input, shape index: {}]
  %s1 = inlined_call_operand.hbm [shape: bf16[128,128], index: 1, kind: input, shape index: {}]
  %s2 = inlined_call_operand.vmem [shape: f32[1,128], index: 2, kind: input, shape index: {}]
  %s3 = inlined_call_operand.hbm [shape: bf16[128,128], index: 3, kind: input, shape index: {}]
  %s4 = inlined_call_operand.vmem [shape: f32[1,128], index: 4, kind: input, shape index: {}]
  %s5 = inlined_call_operand.vmem [shape: f32[16,128], index: 5, kind: output, shape index: {}]
  %s6 = sld [smem:[#allocation0]]
  $region46: #{feed_forward_padded.1} parent=0
    _
  %s8 = ssub.s32 1, %s6
  %s9 = scalar_select 0, %s8, %s6
  $region1: #{feed_forward_padded.1} parent=0
    #allocation2 [shape = 'u8[32768]{0}', space=vmem, size = 0x8000, scoped, tag = 'input window, operand 1, single buffered']
    #allocation3 [shape = 's32[1]{0}', space=sflag, size = 0x4, scoped, tag = 'scoped memory for feed_forward_padded.1']
    #allocation4 [shape = 'u8[32768]{0}', space=vmem, size = 0x8000, scoped, tag = 'input window, operand 3, single buffered']
    #allocation5 [shape = 's32[1]{0}', space=sflag, size = 0x4, scoped, tag = 'scoped memory for feed_forward_padded.1']
    %10 = vsyncpa [#allocation3], 0
    %11 = vsyncpa [#allocation5], 0
    // Predicated region
    $region2: #{feed_forward_padded.1} parent=1 // pred_check
      _
    $region3: #{feed_forward_padded.1} parent=1 // pred_check_branch
      %13 = sbr.rel (0) target = $region5
    $region4: #{feed_forward_padded.1} parent=1 // pred_region
      _
    $region5: #{feed_forward_padded.1} parent=1 // pred_fallthru
      _
    // Predicated region
    $region6: #{feed_forward_padded.1} parent=1 // pred_check
      _
    $region7: #{feed_forward_padded.1} parent=1 // pred_check_branch
      %15 = sbr.rel (0) target = $region9
    $region8: #{feed_forward_padded.1} parent=1 // pred_region
      %s17 = ssub.s32 1024, 1024
      %18 = vsyncadd [#allocation3], %s17
      %s19 = sshll.u32 [#allocation2], 4
      %s20 = int_to_ptr.vmem [resolvable:$true] %s19
      %25 = dma.hbm_to_vmem [thread:$0]  %s1, 1024, %s20, [#allocation3], 64, 64, 4
    $region9: #{feed_forward_padded.1} parent=1 // pred_fallthru
      _
    // Predicated region
    $region10: #{feed_forward_padded.1} parent=1 // pred_check
      _
    $region11: #{feed_forward_padded.1} parent=1 // pred_check_branch
      %27 = sbr.rel (0) target = $region13
    $region12: #{feed_forward_padded.1} parent=1 // pred_region
      _
    $region13: #{feed_forward_padded.1} parent=1 // pred_fallthru
      _
    // Predicated region
    $region14: #{feed_forward_padded.1} parent=1 // pred_check
      _
    $region15: #{feed_forward_padded.1} parent=1 // pred_check_branch
      %29 = sbr.rel (0) target = $region17
    $region16: #{feed_forward_padded.1} parent=1 // pred_region
      %s31 = ssub.s32 1024, 1024
      %32 = vsyncadd [#allocation5], %s31
      %s33 = sshll.u32 [#allocation4], 4
      %s34 = int_to_ptr.vmem [resolvable:$true] %s33
      %39 = dma.hbm_to_vmem [thread:$0]  %s3, 1024, %s34, [#allocation5], 64, 64, 4
    $region17: #{feed_forward_padded.1} parent=1 // pred_fallthru
      _
    // Predicated region
    $region18: #{feed_forward_padded.1} parent=1 // pred_check
      _
    $region19: #{feed_forward_padded.1} parent=1 // pred_check_branch
      %41 = sbr.rel (0) target = $region21
    $region20: #{feed_forward_padded.1} parent=1 // pred_region
      _
    $region21: #{feed_forward_padded.1} parent=1 // pred_fallthru
      _
    // Predicated region
    $region22: #{feed_forward_padded.1} parent=1 // pred_check
      _
    $region23: #{feed_forward_padded.1} parent=1 // pred_check_branch
      %43 = sbr.rel (0) target = $region25
    $region24: #{feed_forward_padded.1} parent=1 // pred_region
      %44 = dma.done [#allocation3], 1024
    $region25: #{feed_forward_padded.1} parent=1 // pred_fallthru
      _
    // Predicated region
    $region26: #{feed_forward_padded.1} parent=1 // pred_check
      _
    $region27: #{feed_forward_padded.1} parent=1 // pred_check_branch
      %46 = sbr.rel (0) target = $region29
    $region28: #{feed_forward_padded.1} parent=1 // pred_region
      %47 = dma.done [#allocation5], 1024
    $region29: #{feed_forward_padded.1} parent=1 // pred_fallthru
      _
    %p49 = scmp.eq.s32.totalorder 0, 0
    // Predicated region
    $region30: #{feed_forward_padded.1} parent=1 // pred_check
      %p50 = pneg %p49
    $region31: #{feed_forward_padded.1} parent=1 // pred_check_branch
      %52 = sbr.rel (%p50) target = $region33
    $region32: #{feed_forward_padded.1} parent=1 // pred_region
      %53 = vst [vmem:[%s5] sm:$0xff] 0.0
      %54 = vst [vmem:[%s5 + $0x8] sm:$0xff] 0.0
    $region33: #{feed_forward_padded.1} parent=1 // pred_fallthru
      _
    %v55 = vld [vmem:[%s0] sm:$0xf]
    %v56 = vld [vmem:[%s0 + $0x4] sm:$0xf]
    %v57 = vld [vmem:[#allocation2] sm:$0xf]
    %v58 = vld [vmem:[#allocation2 + $0x4] sm:$0xf]
    %v59 = vld [vmem:[#allocation2 + $0x8] sm:$0xf]
    %v60 = vld [vmem:[#allocation2 + $0xc] sm:$0xf]
    %v61 = vld [vmem:[#allocation2 + $0x10] sm:$0xf]
    %v62 = vld [vmem:[#allocation2 + $0x14] sm:$0xf]
    %v63 = vld [vmem:[#allocation2 + $0x18] sm:$0xf]
    %v64 = vld [vmem:[#allocation2 + $0x1c] sm:$0xf]
    %v65 = vld [vmem:[#allocation2 + $0x20] sm:$0xf]
    %v66 = vld [vmem:[#allocation2 + $0x24] sm:$0xf]
    %v67 = vld [vmem:[#allocation2 + $0x28] sm:$0xf]
    %v68 = vld [vmem:[#allocation2 + $0x2c] sm:$0xf]
    %v69 = vld [vmem:[#allocation2 + $0x30] sm:$0xf]
    %v70 = vld [vmem:[#allocation2 + $0x34] sm:$0xf]
    %v71 = vld [vmem:[#allocation2 + $0x38] sm:$0xf]
    %v72 = vld [vmem:[#allocation2 + $0x3c] sm:$0xf]
    %v73 = vld [vmem:[%s2] sm:$0x1]
    %v75 = vlaneseq
    %v76 = vshrl.u32 %v75, 7
    %v77 = vsub.s32 0, %v76
    %v78 = vrot.slane %v73, %v77
    %v82 = vunpack.c.l.b16 %v55
    %v83 = vunpack.c.l.b16 %v56
    %v84 = vpack.c.b16 %v83, %v82
    %v102 = vunpack.c.l.b16 %v57
    %v103 = vunpack.c.l.b16 %v58
    %v104 = vunpack.c.l.b16 %v59
    %v105 = vunpack.c.l.b16 %v60
    %v106 = vunpack.c.l.b16 %v61
    %v107 = vunpack.c.l.b16 %v62
    %v108 = vunpack.c.l.b16 %v63
    %v109 = vunpack.c.l.b16 %v64
    %v110 = vunpack.c.l.b16 %v65
    %v111 = vunpack.c.l.b16 %v66
    %v112 = vunpack.c.l.b16 %v67
    %v113 = vunpack.c.l.b16 %v68
    %v114 = vunpack.c.l.b16 %v69
    %v115 = vunpack.c.l.b16 %v70
    %v116 = vunpack.c.l.b16 %v71
    %v117 = vunpack.c.l.b16 %v72
    %v118 = vpack.c.b16 %v103, %v102
    %v119 = vpack.c.b16 %v105, %v104
    %v120 = vpack.c.b16 %v107, %v106
    %v121 = vpack.c.b16 %v109, %v108
    %v122 = vpack.c.b16 %v111, %v110
    %v123 = vpack.c.b16 %v113, %v112
    %v124 = vpack.c.b16 %v115, %v114
    %v125 = vpack.c.b16 %v117, %v116
    %134 = vmatprep.subr.bf16.mxu0 0
    %135 = vmatpush1.bf16.msra.mxu0 %v125
    %136 = vmatprep.subr.bf16.mxu0 0
    %137 = vmatpush1.bf16.msra.mxu0 %v124
    %138 = vmatprep.subr.bf16.mxu0 0
    %139 = vmatpush1.bf16.msra.mxu0 %v123
    %140 = vmatprep.subr.bf16.mxu0 0
    %141 = vmatpush1.bf16.msra.mxu0 %v122
    %142 = vmatprep.subr.bf16.mxu0 0
    %143 = vmatpush1.bf16.msra.mxu0 %v121
    %144 = vmatprep.subr.bf16.mxu0 0
    %145 = vmatpush1.bf16.msra.mxu0 %v120
    %146 = vmatprep.subr.bf16.mxu0 0
    %147 = vmatpush1.bf16.msra.mxu0 %v119
    %148 = vmatprep.subr.bf16.mxu0 0
    %149 = vmatpush1.bf16.msra.mxu0 %v118
    %150 = vmatprep.subr.bf16.mxu0 0
    %151 = vmatpush2.bf16.msra.mxu0 0
    %152 = vmatprep.subr.bf16.mxu0 0
    %153 = vmatpush2.bf16.msra.mxu0 0
    %154 = vmatprep.subr.bf16.mxu0 0
    %155 = vmatpush2.bf16.msra.mxu0 0
    %156 = vmatprep.subr.bf16.mxu0 0
    %157 = vmatpush2.bf16.msra.mxu0 0
    %158 = vmatprep.subr.bf16.mxu0 0
    %159 = vmatpush2.bf16.msra.mxu0 0
    %160 = vmatprep.subr.bf16.mxu0 0
    %161 = vmatpush2.bf16.msra.mxu0 0
    %162 = vmatprep.subr.bf16.mxu0 0
    %163 = vmatpush2.bf16.msra.mxu0 0
    %164 = vmatprep.subr.bf16.mxu0 0
    %165 = vmatpush2.bf16.msra.mxu0 0
    %166 = vmatprep.mubr.bf16.mxu0 0
    %167 = vmatmul.mubr.bf16.gmra.mxu0 %v84
    %v168 = vpop.f32.mrf.mxu0
    %v169 = vadd.f32 %v78, %v168
    %v170 = vpop.f32.mrf.mxu0
    %v171 = vpop.f32.mrf.mxu0
    %v172 = vadd.f32 %v78, %v171
    %v173 = vpop.f32.mrf.mxu0
    %174 = vdwg.mxu0
    %v175 = vmax.f32 %v169, 0.0
    %v176 = vmax.f32 %v172, 0.0
    %v177 = vld [vmem:[%s5] sm:$0xff]
    %v178 = vld [vmem:[%s5 + $0x8] sm:$0xff]
    %v179 = vpack.c.bf16 %v176, %v175
    %v180 = vld [vmem:[#allocation4] sm:$0xf]
    %v181 = vld [vmem:[#allocation4 + $0x4] sm:$0xf]
    %v182 = vld [vmem:[#allocation4 + $0x8] sm:$0xf]
    %v183 = vld [vmem:[#allocation4 + $0xc] sm:$0xf]
    %v184 = vld [vmem:[#allocation4 + $0x10] sm:$0xf]
    %v185 = vld [vmem:[#allocation4 + $0x14] sm:$0xf]
    %v186 = vld [vmem:[#allocation4 + $0x18] sm:$0xf]
    %v187 = vld [vmem:[#allocation4 + $0x1c] sm:$0xf]
    %v188 = vld [vmem:[#allocation4 + $0x20] sm:$0xf]
    %v189 = vld [vmem:[#allocation4 + $0x24] sm:$0xf]
    %v190 = vld [vmem:[#allocation4 + $0x28] sm:$0xf]
    %v191 = vld [vmem:[#allocation4 + $0x2c] sm:$0xf]
    %v192 = vld [vmem:[#allocation4 + $0x30] sm:$0xf]
    %v193 = vld [vmem:[#allocation4 + $0x34] sm:$0xf]
    %v194 = vld [vmem:[#allocation4 + $0x38] sm:$0xf]
    %v195 = vld [vmem:[#allocation4 + $0x3c] sm:$0xf]
    %v212 = vunpack.c.l.b16 %v180
    %v213 = vunpack.c.l.b16 %v181
    %v214 = vunpack.c.l.b16 %v182
    %v215 = vunpack.c.l.b16 %v183
    %v216 = vunpack.c.l.b16 %v184
    %v217 = vunpack.c.l.b16 %v185
    %v218 = vunpack.c.l.b16 %v186
    %v219 = vunpack.c.l.b16 %v187
    %v220 = vunpack.c.l.b16 %v188
    %v221 = vunpack.c.l.b16 %v189
    %v222 = vunpack.c.l.b16 %v190
    %v223 = vunpack.c.l.b16 %v191
    %v224 = vunpack.c.l.b16 %v192
    %v225 = vunpack.c.l.b16 %v193
    %v226 = vunpack.c.l.b16 %v194
    %v227 = vunpack.c.l.b16 %v195
    %v228 = vpack.c.b16 %v213, %v212
    %v229 = vpack.c.b16 %v215, %v214
    %v230 = vpack.c.b16 %v217, %v216
    %v231 = vpack.c.b16 %v219, %v218
    %v232 = vpack.c.b16 %v221, %v220
    %v233 = vpack.c.b16 %v223, %v222
    %v234 = vpack.c.b16 %v225, %v224
    %v235 = vpack.c.b16 %v227, %v226
    %244 = vmatprep.subr.bf16.mxu0 0
    %245 = vmatpush1.bf16.msra.mxu0 %v235
    %246 = vmatprep.subr.bf16.mxu0 0
    %247 = vmatpush1.bf16.msra.mxu0 %v234
    %248 = vmatprep.subr.bf16.mxu0 0
    %249 = vmatpush1.bf16.msra.mxu0 %v233
    %250 = vmatprep.subr.bf16.mxu0 0
    %251 = vmatpush1.bf16.msra.mxu0 %v232
    %252 = vmatprep.subr.bf16.mxu0 0
    %253 = vmatpush1.bf16.msra.mxu0 %v231
    %254 = vmatprep.subr.bf16.mxu0 0
    %255 = vmatpush1.bf16.msra.mxu0 %v230
    %256 = vmatprep.subr.bf16.mxu0 0
    %257 = vmatpush1.bf16.msra.mxu0 %v229
    %258 = vmatprep.subr.bf16.mxu0 0
    %259 = vmatpush1.bf16.msra.mxu0 %v228
    %260 = vmatprep.subr.bf16.mxu0 0
    %261 = vmatpush2.bf16.msra.mxu0 0
    %262 = vmatprep.subr.bf16.mxu0 0
    %263 = vmatpush2.bf16.msra.mxu0 0
    %264 = vmatprep.subr.bf16.mxu0 0
    %265 = vmatpush2.bf16.msra.mxu0 0
    %266 = vmatprep.subr.bf16.mxu0 0
    %267 = vmatpush2.bf16.msra.mxu0 0
    %268 = vmatprep.subr.bf16.mxu0 0
    %269 = vmatpush2.bf16.msra.mxu0 0
    %270 = vmatprep.subr.bf16.mxu0 0
    %271 = vmatpush2.bf16.msra.mxu0 0
    %272 = vmatprep.subr.bf16.mxu0 0
    %273 = vmatpush2.bf16.msra.mxu0 0
    %274 = vmatprep.subr.bf16.mxu0 0
    %275 = vmatpush2.bf16.msra.mxu0 0
    %276 = vmatprep.mubr.bf16.mxu0 0
    %277 = vmatmul.mubr.bf16.gmra.mxu0 %v179
    %v278 = vpop.f32.mrf.mxu0
    %v279 = vadd.f32 0.0, %v278
    %v280 = vpop.f32.mrf.mxu0
    %v281 = vpop.f32.mrf.mxu0
    %v282 = vadd.f32 0.0, %v281
    %v283 = vpop.f32.mrf.mxu0
    %284 = vdwg.mxu0
    %v285 = vadd.f32 %v177, %v279
    %v286 = vadd.f32 %v178, %v282
    %287 = vst [vmem:[%s5] sm:$0xff] %v285
    %288 = vst [vmem:[%s5 + $0x8] sm:$0xff] %v286
    // Predicated region
    $region34: #{feed_forward_padded.1} parent=1 // pred_check
      %p289 = pneg %p49
    $region35: #{feed_forward_padded.1} parent=1 // pred_check_branch
      %291 = sbr.rel (%p289) target = $region37
    $region36: #{feed_forward_padded.1} parent=1 // pred_region
      %v292 = vld [vmem:[%s5] sm:$0xff]
      %v293 = vld [vmem:[%s5 + $0x8] sm:$0xff]
      %v294 = vld [vmem:[%s4] sm:$0x1]
      %v296 = vlaneseq
      %v297 = vshrl.u32 %v296, 7
      %v298 = vsub.s32 0, %v297
      %v299 = vrot.slane %v294, %v298
      %v301 = vadd.f32 %v292, %v299
      %v302 = vadd.f32 %v293, %v299
      %303 = vst [vmem:[%s5] sm:$0xff] %v301
      %304 = vst [vmem:[%s5 + $0x8] sm:$0xff] %v302
    $region37: #{feed_forward_padded.1} parent=1 // pred_fallthru
      _
    // Predicated region
    $region38: #{feed_forward_padded.1} parent=1 // pred_check
      _
    $region39: #{feed_forward_padded.1} parent=1 // pred_check_branch
      %306 = sbr.rel (0) target = $region41
    $region40: #{feed_forward_padded.1} parent=1 // pred_region
      _
    $region41: #{feed_forward_padded.1} parent=1 // pred_fallthru
      _
    // Predicated region
    $region42: #{feed_forward_padded.1} parent=1 // pred_check
      _
    $region43: #{feed_forward_padded.1} parent=1 // pred_check_branch
      %308 = sbr.rel (0) target = $region45
    $region44: #{feed_forward_padded.1} parent=1 // pred_region
      _
    $region45: #{feed_forward_padded.1} parent=1 // pred_fallthru
      _
    %309 = vsyncpa [#allocation3], 1
    %310 = vsyncpa [#allocation5], 1

</llo_original>
